<compile_context>
chip_gen: v5e
topology: v5e:2x2
jax: 0.10.0
libtpu: 0.0.40
codegen_flags: <defaults>
</compile_context>

<pallas_src>
import jax
import jax.numpy as jnp
from jax import lax
from jax.experimental import pallas as pl
from jax.experimental.pallas import tpu as pltpu


def _fact_rand_attn_kernel(r1t_ref, r2_ref, mask_ref, v_ref, out_ref, attn_ref):
    # Block shapes seen by the kernel:
    #   r1t_ref : (1, H, F, tq)    float32   (r1 transposed -> lane-dense)
    #   r2_ref  : (1, H, F, S)     float32
    #   mask_ref: (1, tq, S)       int8      (0 = masked)
    #   v_ref   : (1, H, S, Dv)    float32
    #   out_ref : (1, tq, H*Dv)    float32   (lane-dense output slab)
    #   attn_ref: (1, H, tq, S)    float32
    H = r2_ref.shape[1]

    keep = mask_ref[0] != 0                      # (tq, S) bool, shared by all heads

    outs = []
    for h in range(H):                           # static unroll over heads
        r1t_h = r1t_ref[0, h]                    # (F, tq)
        r2_h = r2_ref[0, h]                      # (F, S)

        # scores = r1[h] @ r2[h]; both operands lane-dense, contract over F.
        scores = lax.dot_general(
            r1t_h, r2_h,
            dimension_numbers=(((0,), (0,)), ((), ())),
            preferred_element_type=jnp.float32,
        )                                        # (tq, S)

        # masked_fill(mask == 0, -1e9)
        scores = jnp.where(keep, scores, jnp.float32(-1e9))

        # Numerically-stable softmax along the key axis.
        row_max = jnp.max(scores, axis=-1, keepdims=True)
        e = jnp.exp(scores - row_max)
        denom = jnp.sum(e, axis=-1, keepdims=True)
        # Exact reciprocal: attn is a checked output (1e-5 tolerance);
        # approx=True (EUP) would be ~free but risks that tolerance.
        p = e * pl.reciprocal(denom, approx=False)

        # Dropout(attn_dropout) is identity in eval mode.
        attn_ref[0, h] = p.astype(attn_ref.dtype)

        # (tq, S) @ (S, Dv) -> (tq, Dv) on the MXU.
        outs.append(jnp.dot(p, v_ref[0, h], preferred_element_type=jnp.float32))

    # Concatenate per-head outputs along lanes -> one lane-dense (tq, H*Dv) store.
    out_ref[0] = jnp.concatenate(outs, axis=-1).astype(out_ref.dtype)


def factorized_random_attention(random_attn_1, random_attn_2, v, len_q, mask):
    """Pallas forward of FactorizedRandomAttention (eval mode, dropout = identity).

    random_attn_1: (B_full, H, S_max, F)   float32
    random_attn_2: (B_full, H, F, S_max)   float32
    v:             (B, H, len_q, Dv)       float32
    mask:          (B, 1, len_q, len_q)    int, 0 = masked out
    returns (output (B, H, len_q, Dv), attn (B, H, len_q, len_q))
    """
    B = mask.shape[0]
    H = random_attn_1.shape[1]
    F = random_attn_1.shape[3]
    Dv = v.shape[3]
    S = int(len_q)

    # Glue (plain XLA): slicing the factors before the matmul is equivalent to
    # slicing the product; transpose r1 so its last dim is S (lane-dense).
    r1t = jnp.transpose(random_attn_1[:B, :, :S, :], (0, 1, 3, 2))   # (B, H, F, S)
    r2 = random_attn_2[:B, :, :, :S]                                 # (B, H, F, S)
    mask_i8 = (mask[:, 0, :S, :S] != 0).astype(jnp.int8)             # (B, S, S)

    # Query tiling: bound the per-step footprint to tq*S. Pick a 128-multiple
    # divisor of S when possible (satisfies (8,128) block rules); otherwise
    # take the full query axis (small-S / demo path).
    if S % 256 == 0:
        tq = 256
    elif S % 128 == 0:
        tq = 128
    else:
        tq = S
    nq = S // tq

    grid = (B, nq)

    out_flat, attn = pl.pallas_call(
        _fact_rand_attn_kernel,
        out_shape=(
            jax.ShapeDtypeStruct((B, S, H * Dv), jnp.float32),
            jax.ShapeDtypeStruct((B, H, S, S), jnp.float32),
        ),
        grid=grid,
        in_specs=[
            pl.BlockSpec((1, H, F, tq), lambda b, qi: (b, 0, 0, qi)),   # r1t
            pl.BlockSpec((1, H, F, S), lambda b, qi: (b, 0, 0, 0)),     # r2  (qi-invariant)
            pl.BlockSpec((1, tq, S), lambda b, qi: (b, qi, 0)),         # mask (head-broadcast)
            pl.BlockSpec((1, H, S, Dv), lambda b, qi: (b, 0, 0, 0)),    # v   (qi-invariant)
        ],
        out_specs=(
            pl.BlockSpec((1, tq, H * Dv), lambda b, qi: (b, qi, 0)),    # lane-dense output slab
            pl.BlockSpec((1, H, tq, S), lambda b, qi: (b, 0, qi, 0)),   # attn
        ),
        compiler_params=pltpu.CompilerParams(
            dimension_semantics=("parallel", "parallel"),
        ),
    )(r1t, r2, mask_i8, v)

    # (B, S, H*Dv) -> (B, H, S, Dv)
    output = jnp.transpose(out_flat.reshape(B, S, H, Dv), (0, 2, 1, 3))
    return output, attn


def _reference(random_attn_1, random_attn_2, v, len_q, mask):
    B = mask.shape[0]
    scores = jnp.einsum("bhsf,bhft->bhst", random_attn_1, random_attn_2)
    scores = scores[:B, :, :len_q, :len_q]
    scores = jnp.where(mask == 0, -1e9, scores)
    attn = jax.nn.softmax(scores, axis=-1)
    out = jnp.einsum("bhst,bhtd->bhsd", attn, v)
    return out, attn


if __name__ == "__main__":
    # Module hyperparameters (small, consistent with the forward pass)
    batch_size = 2
    n_head = 4
    f = 8
    max_seq_len = 16
    len_q = 16          # use the full max_seq_len for the query length
    d_v = 32

    key = jax.random.PRNGKey(0)
    k1, k2, k3, k4 = jax.random.split(key, 4)

    # Deterministic "parameters" (stand-ins for torch.randn in __init__)
    random_attn_1 = jax.random.normal(k1, (batch_size, n_head, max_seq_len, f), jnp.float32)
    random_attn_2 = jax.random.normal(k2, (batch_size, n_head, f, max_seq_len), jnp.float32)

    # Inputs
    v = jax.random.normal(k3, (batch_size, n_head, len_q, d_v), jnp.float32)
    # Causal-ish mask (0 = masked), broadcast over heads: (B, 1, S, S)
    tri = jnp.tril(jnp.ones((len_q, len_q), jnp.int32))
    mask = jnp.broadcast_to(tri[None, None], (batch_size, 1, len_q, len_q))

    # TODO(synk): nn.Dropout(attn_dropout) is stochastic in training mode; this
    # kernel implements the deterministic eval-mode forward (dropout = identity).

    out, attn = factorized_random_attention(random_attn_1, random_attn_2, v, len_q, mask)
    out = jax.block_until_ready(out)
    attn = jax.block_until_ready(attn)

    ref_out, ref_attn = _reference(random_attn_1, random_attn_2, v, len_q, mask)
    assert jnp.allclose(out, ref_out, atol=1e-4, rtol=1e-4), "output mismatch"
    assert jnp.allclose(attn, ref_attn, atol=1e-5, rtol=1e-4), "attn mismatch"

    print("KERNEL_OK")
</pallas_src>

<mosaic_0001>
module attributes {stable_mosaic.version = 11 : i64} {
  func.func @_fact_rand_attn_kernel(%arg0: i32, %arg1: i32, %arg2: memref<1x4x8x16xf32, #tpu.memory_space<vmem>>, %arg3: memref<1x4x8x16xf32, #tpu.memory_space<vmem>>, %arg4: memref<1x16x16xi8, #tpu.memory_space<vmem>>, %arg5: memref<1x4x16x32xf32, #tpu.memory_space<vmem>>, %arg6: memref<1x16x128xf32, #tpu.memory_space<vmem>>, %arg7: memref<1x4x16x16xf32, #tpu.memory_space<vmem>>) attributes {dimension_semantics = [#tpu.dimension_semantics<parallel>, #tpu.dimension_semantics<parallel>], iteration_bounds = array<i64: 2, 1>, scalar_prefetch = 0 : i64, scratch_operands = 0 : i64, tpu.core_type = #tpu.core_type<tc>, window_params = [{transform_indices = @transform_0, window_bounds = array<i64: 1, 4, 8, 16>}, {transform_indices = @transform_1, window_bounds = array<i64: 1, 4, 8, 16>}, {transform_indices = @transform_2, window_bounds = array<i64: 1, 16, 16>}, {transform_indices = @transform_3, window_bounds = array<i64: 1, 4, 16, 32>}, {transform_indices = @transform_4, window_bounds = array<i64: 1, 16, 128>}, {transform_indices = @transform_5, window_bounds = array<i64: 1, 4, 16, 16>}]} {
    %c0 = arith.constant 0 : index
    %c0_0 = arith.constant 0 : index
    %c0_1 = arith.constant 0 : index
    %0 = vector.load %arg4[%c0, %c0_0, %c0_1] : memref<1x16x16xi8, #tpu.memory_space<vmem>>, vector<1x16x16xi8>
    %1 = vector.shape_cast %0 : vector<1x16x16xi8> to vector<16x16xi8>
    %c0_i8 = arith.constant 0 : i8
    %2 = vector.broadcast %c0_i8 : i8 to vector<16x16xi8>
    %3 = arith.cmpi ne, %1, %2 : vector<16x16xi8>
    %c0_2 = arith.constant 0 : index
    %c0_3 = arith.constant 0 : index
    %c0_4 = arith.constant 0 : index
    %c0_5 = arith.constant 0 : index
    %4 = vector.load %arg2[%c0_2, %c0_3, %c0_4, %c0_5] : memref<1x4x8x16xf32, #tpu.memory_space<vmem>>, vector<1x1x8x16xf32>
    %5 = vector.shape_cast %4 : vector<1x1x8x16xf32> to vector<8x16xf32>
    %c0_6 = arith.constant 0 : index
    %c0_7 = arith.constant 0 : index
    %c0_8 = arith.constant 0 : index
    %c0_9 = arith.constant 0 : index
    %6 = vector.load %arg3[%c0_6, %c0_7, %c0_8, %c0_9] : memref<1x4x8x16xf32, #tpu.memory_space<vmem>>, vector<1x1x8x16xf32>
    %7 = vector.shape_cast %6 : vector<1x1x8x16xf32> to vector<8x16xf32>
    %cst = arith.constant dense<0.000000e+00> : vector<16x16xf32>
    %8 = tpu.matmul %5, %7, %cst {dimension_numbers = #tpu.dot_dimension_numbers<[0], [0], [1], [1], [0, 1, 1, 1], [], []>} : vector<8x16xf32>, vector<8x16xf32>, vector<16x16xf32> -> vector<16x16xf32>
    %cst_10 = arith.constant -1.000000e+09 : f32
    %9 = vector.broadcast %cst_10 : f32 to vector<16x16xf32>
    %10 = arith.select %3, %8, %9 : vector<16x16xi1>, vector<16x16xf32>
    %cst_11 = arith.constant dense<0xFF800000> : vector<16xf32>
    %11 = vector.multi_reduction <maximumf>, %10, %cst_11 [1] : vector<16x16xf32> to vector<16xf32>
    %12 = vector.shape_cast %11 : vector<16xf32> to vector<16x1xf32>
    %13 = vector.broadcast %12 : vector<16x1xf32> to vector<16x16xf32>
    %14 = arith.subf %10, %13 : vector<16x16xf32>
    %15 = math.exp %14 : vector<16x16xf32>
    %cst_12 = arith.constant dense<0.000000e+00> : vector<16xf32>
    %16 = vector.multi_reduction <add>, %15, %cst_12 [1] : vector<16x16xf32> to vector<16xf32>
    %17 = vector.shape_cast %16 : vector<16xf32> to vector<16x1xf32>
    %18 = tpu.reciprocal %17 : vector<16x1xf32> -> vector<16x1xf32>
    %19 = vector.broadcast %18 : vector<16x1xf32> to vector<16x16xf32>
    %20 = arith.mulf %15, %19 : vector<16x16xf32>
    %c0_13 = arith.constant 0 : index
    %c0_14 = arith.constant 0 : index
    %c0_15 = arith.constant 0 : index
    %c0_16 = arith.constant 0 : index
    %21 = vector.load %arg7[%c0_13, %c0_14, %c0_15, %c0_16] : memref<1x4x16x16xf32, #tpu.memory_space<vmem>>, vector<1x1x16x16xf32>
    %22 = vector.shape_cast %21 : vector<1x1x16x16xf32> to vector<16x16xf32>
    %23 = vector.shape_cast %20 : vector<16x16xf32> to vector<1x1x16x16xf32>
    tpu.vector_store %arg7[%c0_13, %c0_14, %c0_15, %c0_16], %23 {strides = array<i32>} : memref<1x4x16x16xf32, #tpu.memory_space<vmem>>, vector<1x1x16x16xf32>,
    %c0_17 = arith.constant 0 : index
    %c0_18 = arith.constant 0 : index
    %c0_19 = arith.constant 0 : index
    %c0_20 = arith.constant 0 : index
    %24 = vector.load %arg5[%c0_17, %c0_18, %c0_19, %c0_20] : memref<1x4x16x32xf32, #tpu.memory_space<vmem>>, vector<1x1x16x32xf32>
    %25 = vector.shape_cast %24 : vector<1x1x16x32xf32> to vector<16x32xf32>
    %cst_21 = arith.constant dense<0.000000e+00> : vector<16x32xf32>
    %26 = tpu.matmul %20, %25, %cst_21 {dimension_numbers = #tpu.dot_dimension_numbers<[1], [0], [0], [1], [0, 0, 1, 1], [], []>} : vector<16x16xf32>, vector<16x32xf32>, vector<16x32xf32> -> vector<16x32xf32>
    %c0_22 = arith.constant 0 : index
    %c1 = arith.constant 1 : index
    %c0_23 = arith.constant 0 : index
    %c0_24 = arith.constant 0 : index
    %27 = vector.load %arg2[%c0_22, %c1, %c0_23, %c0_24] : memref<1x4x8x16xf32, #tpu.memory_space<vmem>>, vector<1x1x8x16xf32>
    %28 = vector.shape_cast %27 : vector<1x1x8x16xf32> to vector<8x16xf32>
    %c0_25 = arith.constant 0 : index
    %c1_26 = arith.constant 1 : index
    %c0_27 = arith.constant 0 : index
    %c0_28 = arith.constant 0 : index
    %29 = vector.load %arg3[%c0_25, %c1_26, %c0_27, %c0_28] : memref<1x4x8x16xf32, #tpu.memory_space<vmem>>, vector<1x1x8x16xf32>
    %30 = vector.shape_cast %29 : vector<1x1x8x16xf32> to vector<8x16xf32>
    %cst_29 = arith.constant dense<0.000000e+00> : vector<16x16xf32>
    %31 = tpu.matmul %28, %30, %cst_29 {dimension_numbers = #tpu.dot_dimension_numbers<[0], [0], [1], [1], [0, 1, 1, 1], [], []>} : vector<8x16xf32>, vector<8x16xf32>, vector<16x16xf32> -> vector<16x16xf32>
    %cst_30 = arith.constant -1.000000e+09 : f32
    %32 = vector.broadcast %cst_30 : f32 to vector<16x16xf32>
    %33 = arith.select %3, %31, %32 : vector<16x16xi1>, vector<16x16xf32>
    %cst_31 = arith.constant dense<0xFF800000> : vector<16xf32>
    %34 = vector.multi_reduction <maximumf>, %33, %cst_31 [1] : vector<16x16xf32> to vector<16xf32>
    %35 = vector.shape_cast %34 : vector<16xf32> to vector<16x1xf32>
    %36 = vector.broadcast %35 : vector<16x1xf32> to vector<16x16xf32>
    %37 = arith.subf %33, %36 : vector<16x16xf32>
    %38 = math.exp %37 : vector<16x16xf32>
    %cst_32 = arith.constant dense<0.000000e+00> : vector<16xf32>
    %39 = vector.multi_reduction <add>, %38, %cst_32 [1] : vector<16x16xf32> to vector<16xf32>
    %40 = vector.shape_cast %39 : vector<16xf32> to vector<16x1xf32>
    %41 = tpu.reciprocal %40 : vector<16x1xf32> -> vector<16x1xf32>
    %42 = vector.broadcast %41 : vector<16x1xf32> to vector<16x16xf32>
    %43 = arith.mulf %38, %42 : vector<16x16xf32>
    %c0_33 = arith.constant 0 : index
    %c1_34 = arith.constant 1 : index
    %c0_35 = arith.constant 0 : index
    %c0_36 = arith.constant 0 : index
    %44 = vector.load %arg7[%c0_33, %c1_34, %c0_35, %c0_36] : memref<1x4x16x16xf32, #tpu.memory_space<vmem>>, vector<1x1x16x16xf32>
    %45 = vector.shape_cast %44 : vector<1x1x16x16xf32> to vector<16x16xf32>
    %46 = vector.shape_cast %43 : vector<16x16xf32> to vector<1x1x16x16xf32>
    tpu.vector_store %arg7[%c0_33, %c1_34, %c0_35, %c0_36], %46 {strides = array<i32>} : memref<1x4x16x16xf32, #tpu.memory_space<vmem>>, vector<1x1x16x16xf32>,
    %c0_37 = arith.constant 0 : index
    %c1_38 = arith.constant 1 : index
    %c0_39 = arith.constant 0 : index
    %c0_40 = arith.constant 0 : index
    %47 = vector.load %arg5[%c0_37, %c1_38, %c0_39, %c0_40] : memref<1x4x16x32xf32, #tpu.memory_space<vmem>>, vector<1x1x16x32xf32>
    %48 = vector.shape_cast %47 : vector<1x1x16x32xf32> to vector<16x32xf32>
    %cst_41 = arith.constant dense<0.000000e+00> : vector<16x32xf32>
    %49 = tpu.matmul %43, %48, %cst_41 {dimension_numbers = #tpu.dot_dimension_numbers<[1], [0], [0], [1], [0, 0, 1, 1], [], []>} : vector<16x16xf32>, vector<16x32xf32>, vector<16x32xf32> -> vector<16x32xf32>
    %c0_42 = arith.constant 0 : index
    %c2 = arith.constant 2 : index
    %c0_43 = arith.constant 0 : index
    %c0_44 = arith.constant 0 : index
    %50 = vector.load %arg2[%c0_42, %c2, %c0_43, %c0_44] : memref<1x4x8x16xf32, #tpu.memory_space<vmem>>, vector<1x1x8x16xf32>
    %51 = vector.shape_cast %50 : vector<1x1x8x16xf32> to vector<8x16xf32>
    %c0_45 = arith.constant 0 : index
    %c2_46 = arith.constant 2 : index
    %c0_47 = arith.constant 0 : index
    %c0_48 = arith.constant 0 : index
    %52 = vector.load %arg3[%c0_45, %c2_46, %c0_47, %c0_48] : memref<1x4x8x16xf32, #tpu.memory_space<vmem>>, vector<1x1x8x16xf32>
    %53 = vector.shape_cast %52 : vector<1x1x8x16xf32> to vector<8x16xf32>
    %cst_49 = arith.constant dense<0.000000e+00> : vector<16x16xf32>
    %54 = tpu.matmul %51, %53, %cst_49 {dimension_numbers = #tpu.dot_dimension_numbers<[0], [0], [1], [1], [0, 1, 1, 1], [], []>} : vector<8x16xf32>, vector<8x16xf32>, vector<16x16xf32> -> vector<16x16xf32>
    %cst_50 = arith.constant -1.000000e+09 : f32
    %55 = vector.broadcast %cst_50 : f32 to vector<16x16xf32>
    %56 = arith.select %3, %54, %55 : vector<16x16xi1>, vector<16x16xf32>
    %cst_51 = arith.constant dense<0xFF800000> : vector<16xf32>
    %57 = vector.multi_reduction <maximumf>, %56, %cst_51 [1] : vector<16x16xf32> to vector<16xf32>
    %58 = vector.shape_cast %57 : vector<16xf32> to vector<16x1xf32>
    %59 = vector.broadcast %58 : vector<16x1xf32> to vector<16x16xf32>
    %60 = arith.subf %56, %59 : vector<16x16xf32>
    %61 = math.exp %60 : vector<16x16xf32>
    %cst_52 = arith.constant dense<0.000000e+00> : vector<16xf32>
    %62 = vector.multi_reduction <add>, %61, %cst_52 [1] : vector<16x16xf32> to vector<16xf32>
    %63 = vector.shape_cast %62 : vector<16xf32> to vector<16x1xf32>
    %64 = tpu.reciprocal %63 : vector<16x1xf32> -> vector<16x1xf32>
    %65 = vector.broadcast %64 : vector<16x1xf32> to vector<16x16xf32>
    %66 = arith.mulf %61, %65 : vector<16x16xf32>
    %c0_53 = arith.constant 0 : index
    %c2_54 = arith.constant 2 : index
    %c0_55 = arith.constant 0 : index
    %c0_56 = arith.constant 0 : index
    %67 = vector.load %arg7[%c0_53, %c2_54, %c0_55, %c0_56] : memref<1x4x16x16xf32, #tpu.memory_space<vmem>>, vector<1x1x16x16xf32>
    %68 = vector.shape_cast %67 : vector<1x1x16x16xf32> to vector<16x16xf32>
    %69 = vector.shape_cast %66 : vector<16x16xf32> to vector<1x1x16x16xf32>
    tpu.vector_store %arg7[%c0_53, %c2_54, %c0_55, %c0_56], %69 {strides = array<i32>} : memref<1x4x16x16xf32, #tpu.memory_space<vmem>>, vector<1x1x16x16xf32>,
    %c0_57 = arith.constant 0 : index
    %c2_58 = arith.constant 2 : index
    %c0_59 = arith.constant 0 : index
    %c0_60 = arith.constant 0 : index
    %70 = vector.load %arg5[%c0_57, %c2_58, %c0_59, %c0_60] : memref<1x4x16x32xf32, #tpu.memory_space<vmem>>, vector<1x1x16x32xf32>
    %71 = vector.shape_cast %70 : vector<1x1x16x32xf32> to vector<16x32xf32>
    %cst_61 = arith.constant dense<0.000000e+00> : vector<16x32xf32>
    %72 = tpu.matmul %66, %71, %cst_61 {dimension_numbers = #tpu.dot_dimension_numbers<[1], [0], [0], [1], [0, 0, 1, 1], [], []>} : vector<16x16xf32>, vector<16x32xf32>, vector<16x32xf32> -> vector<16x32xf32>
    %c0_62 = arith.constant 0 : index
    %c3 = arith.constant 3 : index
    %c0_63 = arith.constant 0 : index
    %c0_64 = arith.constant 0 : index
    %73 = vector.load %arg2[%c0_62, %c3, %c0_63, %c0_64] : memref<1x4x8x16xf32, #tpu.memory_space<vmem>>, vector<1x1x8x16xf32>
    %74 = vector.shape_cast %73 : vector<1x1x8x16xf32> to vector<8x16xf32>
    %c0_65 = arith.constant 0 : index
    %c3_66 = arith.constant 3 : index
    %c0_67 = arith.constant 0 : index
    %c0_68 = arith.constant 0 : index
    %75 = vector.load %arg3[%c0_65, %c3_66, %c0_67, %c0_68] : memref<1x4x8x16xf32, #tpu.memory_space<vmem>>, vector<1x1x8x16xf32>
    %76 = vector.shape_cast %75 : vector<1x1x8x16xf32> to vector<8x16xf32>
    %cst_69 = arith.constant dense<0.000000e+00> : vector<16x16xf32>
    %77 = tpu.matmul %74, %76, %cst_69 {dimension_numbers = #tpu.dot_dimension_numbers<[0], [0], [1], [1], [0, 1, 1, 1], [], []>} : vector<8x16xf32>, vector<8x16xf32>, vector<16x16xf32> -> vector<16x16xf32>
    %cst_70 = arith.constant -1.000000e+09 : f32
    %78 = vector.broadcast %cst_70 : f32 to vector<16x16xf32>
    %79 = arith.select %3, %77, %78 : vector<16x16xi1>, vector<16x16xf32>
    %cst_71 = arith.constant dense<0xFF800000> : vector<16xf32>
    %80 = vector.multi_reduction <maximumf>, %79, %cst_71 [1] : vector<16x16xf32> to vector<16xf32>
    %81 = vector.shape_cast %80 : vector<16xf32> to vector<16x1xf32>
    %82 = vector.broadcast %81 : vector<16x1xf32> to vector<16x16xf32>
    %83 = arith.subf %79, %82 : vector<16x16xf32>
    %84 = math.exp %83 : vector<16x16xf32>
    %cst_72 = arith.constant dense<0.000000e+00> : vector<16xf32>
    %85 = vector.multi_reduction <add>, %84, %cst_72 [1] : vector<16x16xf32> to vector<16xf32>
    %86 = vector.shape_cast %85 : vector<16xf32> to vector<16x1xf32>
    %87 = tpu.reciprocal %86 : vector<16x1xf32> -> vector<16x1xf32>
    %88 = vector.broadcast %87 : vector<16x1xf32> to vector<16x16xf32>
    %89 = arith.mulf %84, %88 : vector<16x16xf32>
    %c0_73 = arith.constant 0 : index
    %c3_74 = arith.constant 3 : index
    %c0_75 = arith.constant 0 : index
    %c0_76 = arith.constant 0 : index
    %90 = vector.load %arg7[%c0_73, %c3_74, %c0_75, %c0_76] : memref<1x4x16x16xf32, #tpu.memory_space<vmem>>, vector<1x1x16x16xf32>
    %91 = vector.shape_cast %90 : vector<1x1x16x16xf32> to vector<16x16xf32>
    %92 = vector.shape_cast %89 : vector<16x16xf32> to vector<1x1x16x16xf32>
    tpu.vector_store %arg7[%c0_73, %c3_74, %c0_75, %c0_76], %92 {strides = array<i32>} : memref<1x4x16x16xf32, #tpu.memory_space<vmem>>, vector<1x1x16x16xf32>,
    %c0_77 = arith.constant 0 : index
    %c3_78 = arith.constant 3 : index
    %c0_79 = arith.constant 0 : index
    %c0_80 = arith.constant 0 : index
    %93 = vector.load %arg5[%c0_77, %c3_78, %c0_79, %c0_80] : memref<1x4x16x32xf32, #tpu.memory_space<vmem>>, vector<1x1x16x32xf32>
    %94 = vector.shape_cast %93 : vector<1x1x16x32xf32> to vector<16x32xf32>
    %cst_81 = arith.constant dense<0.000000e+00> : vector<16x32xf32>
    %95 = tpu.matmul %89, %94, %cst_81 {dimension_numbers = #tpu.dot_dimension_numbers<[1], [0], [0], [1], [0, 0, 1, 1], [], []>} : vector<16x16xf32>, vector<16x32xf32>, vector<16x32xf32> -> vector<16x32xf32>
    %96 = tpu.concatenate %26, %49, %72, %95 in 1 : vector<16x32xf32>, vector<16x32xf32>, vector<16x32xf32>, vector<16x32xf32> -> vector<16x128xf32>
    %c0_82 = arith.constant 0 : index
    %c0_83 = arith.constant 0 : index
    %c0_84 = arith.constant 0 : index
    %97 = vector.load %arg6[%c0_82, %c0_83, %c0_84] : memref<1x16x128xf32, #tpu.memory_space<vmem>>, vector<1x16x128xf32>
    %98 = vector.shape_cast %97 : vector<1x16x128xf32> to vector<16x128xf32>
    %99 = vector.shape_cast %96 : vector<16x128xf32> to vector<1x16x128xf32>
    tpu.vector_store %arg6[%c0_82, %c0_83, %c0_84], %99 {strides = array<i32>} : memref<1x16x128xf32, #tpu.memory_space<vmem>>, vector<1x16x128xf32>,
    return
  }
  func.func @transform_0(%arg0: i32, %arg1: i32) -> (i32, i32, i32, i32) {
    %c0_i32 = arith.constant 0 : i32
    %c0_i32_0 = arith.constant 0 : i32
    %c0_i32_1 = arith.constant 0 : i32
    return %arg0, %c0_i32, %c0_i32_0, %arg1 : i32, i32, i32, i32
  }
  func.func @transform_1(%arg0: i32, %arg1: i32) -> (i32, i32, i32, i32) {
    %c0_i32 = arith.constant 0 : i32
    %c0_i32_0 = arith.constant 0 : i32
    %c0_i32_1 = arith.constant 0 : i32
    %c0_i32_2 = arith.constant 0 : i32
    return %arg0, %c0_i32, %c0_i32_0, %c0_i32_1 : i32, i32, i32, i32
  }
  func.func @transform_2(%arg0: i32, %arg1: i32) -> (i32, i32, i32) {
    %c0_i32 = arith.constant 0 : i32
    %c0_i32_0 = arith.constant 0 : i32
    return %arg0, %arg1, %c0_i32 : i32, i32, i32
  }
  func.func @transform_3(%arg0: i32, %arg1: i32) -> (i32, i32, i32, i32) {
    %c0_i32 = arith.constant 0 : i32
    %c0_i32_0 = arith.constant 0 : i32
    %c0_i32_1 = arith.constant 0 : i32
    %c0_i32_2 = arith.constant 0 : i32
    return %arg0, %c0_i32, %c0_i32_0, %c0_i32_1 : i32, i32, i32, i32
  }
  func.func @transform_4(%arg0: i32, %arg1: i32) -> (i32, i32, i32) {
    %c0_i32 = arith.constant 0 : i32
    %c0_i32_0 = arith.constant 0 : i32
    return %arg0, %arg1, %c0_i32 : i32, i32, i32
  }
  func.func @transform_5(%arg0: i32, %arg1: i32) -> (i32, i32, i32, i32) {
    %c0_i32 = arith.constant 0 : i32
    %c0_i32_0 = arith.constant 0 : i32
    %c0_i32_1 = arith.constant 0 : i32
    return %arg0, %c0_i32, %arg1, %c0_i32_0 : i32, i32, i32, i32
  }
}

</mosaic_0001>

<llo_original>
// kernel: tpu_custom_call.1
$region0: #{tpu_custom_call.1}
  #allocation0 [shape = 'u32[]', space=smem, size = 0x4, offset = 0x4, fixed_abs, tag = 'smem constant byte address 0x4 - core index']
  #allocation1 [shape = 'u32[72,128]{1,0:T(1,128)}', space=vmem, size = 0x9000, scoped, tag = 'internal scratch']
  %s0 = inlined_call_operand.hbm [shape: f32[2,4,8,16], index: 0, kind: input, shape index: {}]
  %s1 = inlined_call_operand.hbm [shape: f32[2,4,8,16], index: 1, kind: input, shape index: {}]
  %s2 = inlined_call_operand.hbm [shape: s8[2,16,16], index: 2, kind: input, shape index: {}]
  %s3 = inlined_call_operand.hbm [shape: f32[2,4,16,32], index: 3, kind: input, shape index: {}]
  %s4 = inlined_call_operand.hbm [shape: f32[2,16,128], index: 4, kind: output, shape index: {0}]
  %s5 = inlined_call_operand.hbm [shape: f32[2,4,16,16], index: 5, kind: output, shape index: {1}]
  %6 = xla_tuple %s4, %s5
  %s7 = sld [smem:[#allocation0]]
  $region73: #{tpu_custom_call.1} parent=0
    _
  %s9 = ssub.s32 1, %s7
  %s10 = scalar_select 0, %s9, %s7
  $region1: #{tpu_custom_call.1} parent=0
    #allocation2 [shape = 'u8[32768]{0}', space=vmem, size = 0x8000, scoped, tag = 'input window, operand 0']
    #allocation3 [shape = 's32[2]{0}', space=sflag, size = 0x8, scoped, tag = 'scoped memory for tpu_custom_call.1']
    #allocation4 [shape = 's32[2]{0}', space=sflag, size = 0x8, scoped, tag = 'scoped memory for tpu_custom_call.1']
    #allocation5 [shape = 'u8[32768]{0}', space=vmem, size = 0x8000, scoped, tag = 'input window, operand 1']
    #allocation6 [shape = 's32[2]{0}', space=sflag, size = 0x8, scoped, tag = 'scoped memory for tpu_custom_call.1']
    #allocation7 [shape = 'u8[4096]{0}', space=vmem, size = 0x1000, scoped, tag = 'input window, operand 2']
    #allocation8 [shape = 'u8[65536]{0}', space=vmem, size = 0x10000, scoped, tag = 'input window, operand 3']
    #allocation9 [shape = 's32[2]{0}', space=sflag, size = 0x8, scoped, tag = 'scoped memory for tpu_custom_call.1']
    #allocation10 [shape = 'u8[16384]{0}', space=vmem, size = 0x4000, scoped, tag = 'output window, operand 0']
    #allocation11 [shape = 'u8[65536]{0}', space=vmem, size = 0x10000, scoped, tag = 'output window, operand 1']
    #allocation12 [shape = 's32[2]{0}', space=sflag, size = 0x8, scoped, tag = 'scoped memory for tpu_custom_call.1']
    %11 = vsyncpa [#allocation3], 0
    %s12 = scalar_lea.sflag [#allocation3], 1
    %13 = vsyncpa %s12, 0
    %14 = vsyncpa [#allocation6], 0
    %s15 = scalar_lea.sflag [#allocation6], 1
    %16 = vsyncpa %s15, 0
    %17 = vsyncpa [#allocation9], 0
    %s18 = scalar_lea.sflag [#allocation9], 1
    %19 = vsyncpa %s18, 0
    %20 = vsyncpa [#allocation4], 0
    %s21 = scalar_lea.sflag [#allocation4], 1
    %22 = vsyncpa %s21, 0
    %23 = vsyncpa [#allocation12], 0
    %s24 = scalar_lea.sflag [#allocation12], 1
    %25 = vsyncpa %s24, 0
    loop: start=0, step=1, limit=4
    $region2: #{tpu_custom_call.1} parent=1 // loop_pre_header
      _
    $region3: #{tpu_custom_call.1} parent=1 // loop_header
      %s27 = sphi 0, %s31
      %p28 = scmp.ge.s32.totalorder %s27, 4
      %s34 = sphi 0, %s46
      %s35 = sphi 0, %s42
      %s36 = sphi 0, %s34
      %s37 = sphi 0, %s35
      %s38 = sphi 0, %s36
      %s39 = sphi 0, %s37
      %s51 = sphi 0, %s53
      %s54 = sphi 0, %s51
      %s55 = sphi 0, %s54
      %s71 = sphi 0, %s55
      %s77 = sphi 0, %s79
      %s80 = sphi 0, %s77
      %s81 = sphi 0, %s80
      %s97 = sphi 0, %s81
      %s105 = sphi 0, %s107
      %s108 = sphi 0, %s105
      %s109 = sphi 0, %s108
      %s125 = sphi 0, %s109
      %s131 = sphi 0, %s133
      %s134 = sphi 0, %s131
      %s135 = sphi 0, %s134
      %s151 = sphi 0, %s135
      %s159 = sphi 0, %s161
      %s162 = sphi 0, %s159
      %s163 = sphi 0, %s162
      %s179 = sphi 0, %s163
      %s187 = sphi 0, %s189
      %s190 = sphi 0, %s187
      %s191 = sphi 0, %s190
      %s207 = sphi 0, %s191
    $region4: #{tpu_custom_call.1} parent=1 // loop_header_branch
      %30 = sbr.rel (%p28) target = $region8
    $region5: #{tpu_custom_call.1} parent=1 // loop_body
      %s32 = ssub.s32 %s27, 1
      %s33 = ssub.s32 %s27, 2
      %s40 = sadd.s32 1, %s35
      %p41 = scmp.ge.s32.totalorder %s40, 1
      %s42 = scalar_select %p41, 0, %s40
      %s43 = sadd.s32 1, %s34
      %s44 = scalar_select %p41, %s43, %s34
      %p45 = scmp.ge.s32.totalorder %s44, 2
      %s46 = scalar_select %p45, 0, %s44
      %s47 = ssub.s32 %s34, %s46
      %s48 = ssub.s32 %s35, %s42
      %s49 = sor.u32 %s47, %s48
      %p50 = scmp.eq.s32.totalorder %s49, 0
      %s52 = sadd.s32 %s51, 1
      %s53 = scalar_select %p50, %s51, %s52
      %p56 = pneg %p50
      %p57 = scmp.eq.s32.totalorder %s27, 1
      %p58 = por %p56, %p57
      %p59 = scmp.ne.s32.totalorder %s51, %s54
      %p60 = scmp.eq.s32.totalorder %s27, 0
      %p61 = por %p59, %p60
      %p62 = scmp.ne.s32.totalorder %s51, %s54
      %p63 = scmp.eq.s32.totalorder %s32, 1
      %p64 = por %p62, %p63
      %p65 = scmp.ne.s32.totalorder %s54, %s55
      %p66 = scmp.eq.s32.totalorder %s32, 0
      %p67 = por %p65, %p66
      %p68 = scmp.ne.s32.totalorder %s54, %s55
      %p69 = scmp.eq.s32.totalorder %s33, 1
      %p70 = por %p68, %p69
      %p72 = scmp.ne.s32.totalorder %s55, %s71
      %p73 = scmp.eq.s32.totalorder %s33, 0
      %p74 = por %p72, %p73
      %s75 = ssub.s32 %s34, %s46
      %p76 = scmp.eq.s32.totalorder %s75, 0
      %s78 = sadd.s32 %s77, 1
      %s79 = scalar_select %p76, %s77, %s78
      %p82 = pneg %p76
      %p83 = scmp.eq.s32.totalorder %s27, 1
      %p84 = por %p82, %p83
      %p85 = scmp.ne.s32.totalorder %s77, %s80
      %p86 = scmp.eq.s32.totalorder %s27, 0
      %p87 = por %p85, %p86
      %p88 = scmp.ne.s32.totalorder %s77, %s80
      %p89 = scmp.eq.s32.totalorder %s32, 1
      %p90 = por %p88, %p89
      %p91 = scmp.ne.s32.totalorder %s80, %s81
      %p92 = scmp.eq.s32.totalorder %s32, 0
      %p93 = por %p91, %p92
      %p94 = scmp.ne.s32.totalorder %s80, %s81
      %p95 = scmp.eq.s32.totalorder %s33, 1
      %p96 = por %p94, %p95
      %p98 = scmp.ne.s32.totalorder %s81, %s97
      %p99 = scmp.eq.s32.totalorder %s33, 0
      %p100 = por %p98, %p99
      %s101 = ssub.s32 %s34, %s46
      %s102 = ssub.s32 %s35, %s42
      %s103 = sor.u32 %s101, %s102
      %p104 = scmp.eq.s32.totalorder %s103, 0
      %s106 = sadd.s32 %s105, 1
      %s107 = scalar_select %p104, %s105, %s106
      %p110 = pneg %p104
      %p111 = scmp.eq.s32.totalorder %s27, 1
      %p112 = por %p110, %p111
      %p113 = scmp.ne.s32.totalorder %s105, %s108
      %p114 = scmp.eq.s32.totalorder %s27, 0
      %p115 = por %p113, %p114
      %p116 = scmp.ne.s32.totalorder %s105, %s108
      %p117 = scmp.eq.s32.totalorder %s32, 1
      %p118 = por %p116, %p117
      %p119 = scmp.ne.s32.totalorder %s108, %s109
      %p120 = scmp.eq.s32.totalorder %s32, 0
      %p121 = por %p119, %p120
      %p122 = scmp.ne.s32.totalorder %s108, %s109
      %p123 = scmp.eq.s32.totalorder %s33, 1
      %p124 = por %p122, %p123
      %p126 = scmp.ne.s32.totalorder %s109, %s125
      %p127 = scmp.eq.s32.totalorder %s33, 0
      %p128 = por %p126, %p127
      %s129 = ssub.s32 %s34, %s46
      %p130 = scmp.eq.s32.totalorder %s129, 0
      %s132 = sadd.s32 %s131, 1
      %s133 = scalar_select %p130, %s131, %s132
      %p136 = pneg %p130
      %p137 = scmp.eq.s32.totalorder %s27, 1
      %p138 = por %p136, %p137
      %p139 = scmp.ne.s32.totalorder %s131, %s134
      %p140 = scmp.eq.s32.totalorder %s27, 0
      %p141 = por %p139, %p140
      %p142 = scmp.ne.s32.totalorder %s131, %s134
      %p143 = scmp.eq.s32.totalorder %s32, 1
      %p144 = por %p142, %p143
      %p145 = scmp.ne.s32.totalorder %s134, %s135
      %p146 = scmp.eq.s32.totalorder %s32, 0
      %p147 = por %p145, %p146
      %p148 = scmp.ne.s32.totalorder %s134, %s135
      %p149 = scmp.eq.s32.totalorder %s33, 1
      %p150 = por %p148, %p149
      %p152 = scmp.ne.s32.totalorder %s135, %s151
      %p153 = scmp.eq.s32.totalorder %s33, 0
      %p154 = por %p152, %p153
      %s155 = ssub.s32 %s34, %s46
      %s156 = ssub.s32 %s35, %s42
      %s157 = sor.u32 %s155, %s156
      %p158 = scmp.eq.s32.totalorder %s157, 0
      %s160 = sadd.s32 %s159, 1
      %s161 = scalar_select %p158, %s159, %s160
      %p164 = pneg %p158
      %p165 = scmp.eq.s32.totalorder %s27, 1
      %p166 = por %p164, %p165
      %p167 = scmp.ne.s32.totalorder %s159, %s162
      %p168 = scmp.eq.s32.totalorder %s27, 0
      %p169 = por %p167, %p168
      %p170 = scmp.ne.s32.totalorder %s159, %s162
      %p171 = scmp.eq.s32.totalorder %s32, 1
      %p172 = por %p170, %p171
      %p173 = scmp.ne.s32.totalorder %s162, %s163
      %p174 = scmp.eq.s32.totalorder %s32, 0
      %p175 = por %p173, %p174
      %p176 = scmp.ne.s32.totalorder %s162, %s163
      %p177 = scmp.eq.s32.totalorder %s33, 1
      %p178 = por %p176, %p177
      %p180 = scmp.ne.s32.totalorder %s163, %s179
      %p181 = scmp.eq.s32.totalorder %s33, 0
      %p182 = por %p180, %p181
      %s183 = ssub.s32 %s34, %s46
      %s184 = ssub.s32 %s35, %s42
      %s185 = sor.u32 %s183, %s184
      %p186 = scmp.eq.s32.totalorder %s185, 0
      %s188 = sadd.s32 %s187, 1
      %s189 = scalar_select %p186, %s187, %s188
      %p192 = pneg %p186
      %p193 = scmp.eq.s32.totalorder %s27, 1
      %p194 = por %p192, %p193
      %p195 = scmp.ne.s32.totalorder %s187, %s190
      %p196 = scmp.eq.s32.totalorder %s27, 0
      %p197 = por %p195, %p196
      %p198 = scmp.ne.s32.totalorder %s187, %s190
      %p199 = scmp.eq.s32.totalorder %s32, 1
      %p200 = por %p198, %p199
      %p201 = scmp.ne.s32.totalorder %s190, %s191
      %p202 = scmp.eq.s32.totalorder %s32, 0
      %p203 = por %p201, %p202
      %p204 = scmp.ne.s32.totalorder %s190, %s191
      %p205 = scmp.eq.s32.totalorder %s33, 1
      %p206 = por %p204, %p205
      %p208 = scmp.ne.s32.totalorder %s191, %s207
      %p209 = scmp.eq.s32.totalorder %s33, 0
      %p210 = por %p208, %p209
      %p211 = scmp.le.s32.totalorder 1, %s27
      %p212 = scmp.lt.s32.totalorder %s27, 3
      %p213 = pnand %p211, %p212
      %p214 = pneg %p213
      // Predicated region
      $region9: #{tpu_custom_call.1} parent=5 // pred_check
        _
      $region10: #{tpu_custom_call.1} parent=5 // pred_check_branch
        %216 = sbr.rel (%p213) target = $region12
      $region11: #{tpu_custom_call.1} parent=5 // pred_region
        %s217 = ssub.s32 %s27, 1
      $region12: #{tpu_custom_call.1} parent=5 // pred_fallthru
        _
      %p218 = scmp.lt.s32.totalorder %s27, 2
      // Predicated region
      $region13: #{tpu_custom_call.1} parent=5 // pred_check
        %p219 = pneg %p218
      $region14: #{tpu_custom_call.1} parent=5 // pred_check_branch
        %221 = sbr.rel (%p219) target = $region16
      $region15: #{tpu_custom_call.1} parent=5 // pred_region
        // Predicated region
        $region17: #{tpu_custom_call.1} parent=15 // pred_check
          %p222 = pneg %p61
        $region18: #{tpu_custom_call.1} parent=15 // pred_check_branch
          %224 = sbr.rel (%p222) target = $region20
        $region19: #{tpu_custom_call.1} parent=15 // pred_region
          %s225 = sand.u32 %s51, 1
          %s226 = scalar_lea.sflag [#allocation3], %s225
          %s227 = sand.u32 %s51, 1
          %s228 = smul.addr %s227, 32
          %s229 = scalar_lea.vmem [#allocation2], %s228
          %231 = vsyncadd %s226, 0
          %s232 = smul.addr %s34, 4
          %s233 = sadd.s32 %s35, %s232
          %s234 = smul.addr %s233, 8
          %s235 = scalar_lea.hbm %s0, %s234
          %s236 = sshll.u32 %s235, 4
          %s237 = int_to_ptr.hbm [resolvable:$true] %s236
          %s238 = sshll.u32 %s229, 4
          %s239 = int_to_ptr.vmem [resolvable:$true] %s238
          %244 = dma.hbm_to_vmem [thread:$0]  %s237, 512, %s239, %s226, 128, 128, 8
        $region20: #{tpu_custom_call.1} parent=15 // pred_fallthru
          _
        // Predicated region
        $region21: #{tpu_custom_call.1} parent=15 // pred_check
          %p245 = pneg %p87
        $region22: #{tpu_custom_call.1} parent=15 // pred_check_branch
          %247 = sbr.rel (%p245) target = $region24
        $region23: #{tpu_custom_call.1} parent=15 // pred_region
          %s248 = sand.u32 %s27, 1
          %s249 = scalar_lea.sflag [#allocation6], %s248
          %s250 = sand.u32 %s77, 1
          %s251 = smul.addr %s250, 32
          %s252 = scalar_lea.vmem [#allocation5], %s251
          %254 = vsyncadd %s249, 0
          %s255 = smul.addr %s34, 4
          %s256 = smul.addr %s255, 8
          %s257 = scalar_lea.hbm %s1, %s256
          %s258 = sshll.u32 %s257, 4
          %s259 = int_to_ptr.hbm [resolvable:$true] %s258
          %s260 = sshll.u32 %s252, 4
          %s261 = int_to_ptr.vmem [resolvable:$true] %s260
          %266 = dma.hbm_to_vmem [thread:$0]  %s259, 512, %s261, %s249, 128, 128, 8
        $region24: #{tpu_custom_call.1} parent=15 // pred_fallthru
          _
        // Predicated region
        $region25: #{tpu_custom_call.1} parent=15 // pred_check
          %p267 = pneg %p115
        $region26: #{tpu_custom_call.1} parent=15 // pred_check_branch
          %269 = sbr.rel (%p267) target = $region28
        $region27: #{tpu_custom_call.1} parent=15 // pred_region
          %s270 = sand.u32 %s27, 1
          %s271 = scalar_lea.sflag [#allocation6], %s270
          %s272 = sand.u32 %s105, 1
          %s273 = smul.addr %s272, 4
          %s274 = scalar_lea.vmem [#allocation7], %s273
          %s275 = smul.u32 2, %s35
          %277 = vsyncadd %s271, 0
          %s278 = smul.addr %s34, 2
          %s279 = sadd.s32 %s275, %s278
          %s280 = smul.addr %s279, 2
          %s281 = scalar_lea.hbm %s2, %s280
          %s282 = sshll.u32 %s281, 4
          %s283 = int_to_ptr.hbm [resolvable:$true] %s282
          %s284 = sshll.u32 %s274, 4
          %s285 = int_to_ptr.vmem [resolvable:$true] %s284
          %290 = dma.hbm_to_vmem [thread:$0]  %s283, 64, %s285, %s271, 32, 32, 2
        $region28: #{tpu_custom_call.1} parent=15 // pred_fallthru
          _
        // Predicated region
        $region29: #{tpu_custom_call.1} parent=15 // pred_check
          %p291 = pneg %p141
        $region30: #{tpu_custom_call.1} parent=15 // pred_check_branch
          %293 = sbr.rel (%p291) target = $region32
        $region31: #{tpu_custom_call.1} parent=15 // pred_region
          %s294 = sand.u32 %s131, 1
          %s295 = scalar_lea.sflag [#allocation9], %s294
          %s296 = sand.u32 %s131, 1
          %s297 = smul.addr %s296, 64
          %s298 = scalar_lea.vmem [#allocation8], %s297
          %300 = vsyncadd %s295, 0
          %s301 = smul.addr %s34, 8
          %s302 = smul.addr %s301, 8
          %s303 = scalar_lea.hbm %s3, %s302
          %s304 = sshll.u32 %s303, 4
          %s305 = int_to_ptr.hbm [resolvable:$true] %s304
          %s306 = sshll.u32 %s298, 4
          %s307 = int_to_ptr.vmem [resolvable:$true] %s306
          %312 = dma.hbm_to_vmem [thread:$0]  %s305, 1024, %s307, %s295, 128, 128, 8
        $region32: #{tpu_custom_call.1} parent=15 // pred_fallthru
          _
      $region16: #{tpu_custom_call.1} parent=5 // pred_fallthru
        _
      %p313 = scmp.le.s32.totalorder 1, %s27
      %p314 = scmp.lt.s32.totalorder %s27, 3
      %p315 = pnand %p313, %p314
      %p316 = pneg %p315
      // Predicated region
      $region33: #{tpu_custom_call.1} parent=5 // pred_check
        _
      $region34: #{tpu_custom_call.1} parent=5 // pred_check_branch
        %318 = sbr.rel (%p315) target = $region36
      $region35: #{tpu_custom_call.1} parent=5 // pred_region
        %s319 = ssub.s32 %s27, 1
        %s320 = sand.u32 %s54, 1
        %s321 = scalar_lea.sflag [#allocation3], %s320
        %s322 = sand.u32 %s54, 1
        %s323 = smul.addr %s322, 32
        %s324 = scalar_lea.vmem [#allocation2], %s323
        // Predicated region
        $region37: #{tpu_custom_call.1} parent=35 // pred_check
          %p325 = pneg %p67
        $region38: #{tpu_custom_call.1} parent=35 // pred_check_branch
          %327 = sbr.rel (%p325) target = $region40
        $region39: #{tpu_custom_call.1} parent=35 // pred_region
          %329 = dma.done %s321, 512
        $region40: #{tpu_custom_call.1} parent=35 // pred_fallthru
          _
        %s330 = sand.u32 %s32, 1
        %s331 = scalar_lea.sflag [#allocation6], %s330
        %s332 = sand.u32 %s80, 1
        %s333 = smul.addr %s332, 32
        %s334 = scalar_lea.vmem [#allocation5], %s333
        // Predicated region
        $region41: #{tpu_custom_call.1} parent=35 // pred_check
          %p335 = pneg %p93
        $region42: #{tpu_custom_call.1} parent=35 // pred_check_branch
          %337 = sbr.rel (%p335) target = $region44
        $region43: #{tpu_custom_call.1} parent=35 // pred_region
          %339 = dma.done %s331, 512
        $region44: #{tpu_custom_call.1} parent=35 // pred_fallthru
          _
        %s340 = sand.u32 %s32, 1
        %s341 = scalar_lea.sflag [#allocation6], %s340
        %s342 = sand.u32 %s108, 1
        %s343 = smul.addr %s342, 4
        %s344 = scalar_lea.vmem [#allocation7], %s343
        // Predicated region
        $region45: #{tpu_custom_call.1} parent=35 // pred_check
          %p345 = pneg %p121
        $region46: #{tpu_custom_call.1} parent=35 // pred_check_branch
          %347 = sbr.rel (%p345) target = $region48
        $region47: #{tpu_custom_call.1} parent=35 // pred_region
          %349 = dma.done %s341, 64
        $region48: #{tpu_custom_call.1} parent=35 // pred_fallthru
          _
        %s350 = sand.u32 %s134, 1
        %s351 = scalar_lea.sflag [#allocation9], %s350
        %s352 = sand.u32 %s134, 1
        %s353 = smul.addr %s352, 64
        %s354 = scalar_lea.vmem [#allocation8], %s353
        // Predicated region
        $region49: #{tpu_custom_call.1} parent=35 // pred_check
          %p355 = pneg %p147
        $region50: #{tpu_custom_call.1} parent=35 // pred_check_branch
          %357 = sbr.rel (%p355) target = $region52
        $region51: #{tpu_custom_call.1} parent=35 // pred_region
          %359 = dma.done %s351, 1024
        $region52: #{tpu_custom_call.1} parent=35 // pred_fallthru
          _
        %s360 = sand.u32 %s54, 1
        %s361 = scalar_lea.sflag [#allocation3], %s360
        %s362 = sand.u32 %s54, 1
        %s363 = smul.addr %s362, 32
        %s364 = scalar_lea.vmem [#allocation2], %s363
        %p365 = pneg %p67
        %p366 = pneg %p64
        %s367 = sand.u32 %s32, 1
        %s368 = scalar_lea.sflag [#allocation6], %s367
        %s369 = sand.u32 %s80, 1
        %s370 = smul.addr %s369, 32
        %s371 = scalar_lea.vmem [#allocation5], %s370
        %p372 = pneg %p93
        %p373 = pneg %p90
        %s374 = sand.u32 %s32, 1
        %s375 = scalar_lea.sflag [#allocation6], %s374
        %s376 = sand.u32 %s108, 1
        %s377 = smul.addr %s376, 4
        %s378 = scalar_lea.vmem [#allocation7], %s377
        %p379 = pneg %p121
        %p380 = pneg %p118
        %s381 = sand.u32 %s134, 1
        %s382 = scalar_lea.sflag [#allocation9], %s381
        %s383 = sand.u32 %s134, 1
        %s384 = smul.addr %s383, 64
        %s385 = scalar_lea.vmem [#allocation8], %s384
        %p386 = pneg %p147
        %p387 = pneg %p144
        %p388 = pneg %p175
        %p389 = pneg %p172
        %s390 = sand.u32 %s162, 1
        %s391 = scalar_lea.sflag [#allocation4], %s390
        %s392 = sand.u32 %s162, 1
        %s393 = smul.addr %s392, 16
        %s394 = scalar_lea.vmem [#allocation10], %s393
        %p395 = pneg %p203
        %p396 = pneg %p200
        %s397 = sand.u32 %s190, 1
        %s398 = scalar_lea.sflag [#allocation12], %s397
        %s399 = sand.u32 %s190, 1
        %s400 = smul.addr %s399, 64
        %s401 = scalar_lea.vmem [#allocation11], %s400
        %s402 = smul.u32 2, %s37
        %s403 = smul.u32 2, %s37
        %s404 = smul.u32 2, %s37
        %v407 = vld [vmem:[%s344] sm:$0x3]
        %v408 = vld [vmem:[%s344 + $0x2] sm:$0x3]
        %vm409 = vnez %v407
        %vm410 = vnez %v408
        %v411 = vld [vmem:[%s324] sm:$0xff]
        %v412 = vld [vmem:[%s334] sm:$0xff]
        %413 = vxpose.xlu0.b32.start [1/16] %v411, 128
        %414 = vxpose.xlu0.b32.cont [2/16] 0.0, 128
        %415 = vxpose.xlu0.b32.cont [3/16] 0.0, 128
        %416 = vxpose.xlu0.b32.cont [4/16] 0.0, 128
        %417 = vxpose.xlu0.b32.cont [5/16] 0.0, 128
        %418 = vxpose.xlu0.b32.cont [6/16] 0.0, 128
        %419 = vxpose.xlu0.b32.cont [7/16] 0.0, 128
        %420 = vxpose.xlu0.b32.cont [8/16] 0.0, 128
        %421 = vxpose.xlu0.b32.cont [9/16] 0.0, 128
        %422 = vxpose.xlu0.b32.cont [10/16] 0.0, 128
        %423 = vxpose.xlu0.b32.cont [11/16] 0.0, 128
        %424 = vxpose.xlu0.b32.cont [12/16] 0.0, 128
        %425 = vxpose.xlu0.b32.cont [13/16] 0.0, 128
        %426 = vxpose.xlu0.b32.cont [14/16] 0.0, 128
        %427 = vxpose.xlu0.b32.cont [15/16] 0.0, 128
        %428 = vxpose.xlu0.b32.end [16/16] 0.0, 128
        %v429 = vpop.trf.xlu0
        %v430 = vpop.trf.xlu0
        %v431 = vpop.trf.xlu0
        %v432 = vpop.trf.xlu0
        %v433 = vpop.trf.xlu0
        %v434 = vpop.trf.xlu0
        %v435 = vpop.trf.xlu0
        %v436 = vpop.trf.xlu0
        %v437 = vpop.trf.xlu0
        %v438 = vpop.trf.xlu0
        %v439 = vpop.trf.xlu0
        %v440 = vpop.trf.xlu0
        %v441 = vpop.trf.xlu0
        %v442 = vpop.trf.xlu0
        %v443 = vpop.trf.xlu0
        %v444 = vpop.trf.xlu0
        %vm445 = vcmask 64512
        %v447 = vsel %vm445, %v429, 0
        %v450 = vsel %vm445, %v430, 0
        %452 = vmatpush.msra.mxu0 0.0
        %453 = vmatpush.msra.mxu0 0.0
        %454 = vmatpush.msra.mxu0 0.0
        %455 = vmatpush.msra.mxu0 0.0
        %456 = vmatpush.msra.mxu0 0.0
        %457 = vmatpush.msra.mxu0 0.0
        %458 = vmatpush.msra.mxu0 0.0
        %459 = vmatpush.msra.mxu0 0.0
        %460 = vmatpush.msra.mxu0 0.0
        %461 = vmatpush.msra.mxu0 0.0
        %462 = vmatpush.msra.mxu0 0.0
        %463 = vmatpush.msra.mxu0 0.0
        %464 = vmatpush.msra.mxu0 0.0
        %465 = vmatpush.msra.mxu0 0.0
        %466 = vmatpush.msra.mxu0 0.0
        %467 = vmatpush.msra.mxu0 %v412
        %468 = vmatmul.f32.gmra.mxu0 %v447
        %v469 = vpop.f32.mrf.mxu0
        %v470 = vadd.f32 0.0, %v469
        %471 = vmatmul.f32.gmra.mxu0 %v450
        %v472 = vpop.f32.mrf.mxu0
        %v473 = vadd.f32 0.0, %v472
        %474 = vdwg.mxu0
        %v475 = vsel %vm409, 16843009, 0
        %v476 = vsel %vm410, 16843009, 0
        %v477 = vunpack.c.0.s8 %v475
        %v478 = vunpack.c.0.s8 %v476
        %vm479 = vcmp.ne.s32.totalorder %v477, 0
        %vm480 = vcmp.ne.s32.totalorder %v478, 0
        %v481 = vsel %vm479, %v470, -1e+09
        %v482 = vsel %vm480, %v473, -1e+09
        %vm483 = vcmask 130048
        %v484 = vsel %vm483, %v481, -inf
        %485 = vmax.xlane.f32.xlu0 %v484
        %v486 = vpop.xlane.xlu0 %485
        %v487 = vsel %vm483, %v482, -inf
        %488 = vmax.xlane.f32.xlu0 %v487
        %v489 = vpop.xlane.xlu0 %488
        %v490 = vsub.f32 %v481, %v486
        %v491 = vsub.f32 %v482, %v489
        %v492 = vmul.f32 %v490, 1.442695
        %v493 = vpow.pop %v492
        %v494 = vmul.f32 %v491, 1.442695
        %v495 = vpow.pop %v494
        %v496 = vsel %vm483, %v493, 0.0
        %497 = vadd.xlane.f32.xlu0 %v496
        %v498 = vpop.xlane.xlu0 %497
        %v499 = vsel %vm483, %v495, 0.0
        %500 = vadd.xlane.f32.xlu0 %v499
        %v501 = vpop.xlane.xlu0 %500
        %v502 = vrcp.pop %v498
        %v503 = vmul.f32 %v498, %v502
        %v504 = vsub.f32 1.0, %v503
        %v505 = vmul.f32 %v502, %v504
        %v506 = vadd.f32 %v502, %v505
        %vm507 = vweird.f32 %v498
        %vm508 = vweird.f32 %v502
        %vm509 = vmor %vm507, %vm508
        %v510 = vsel %vm509, %v502, %v506
        %v511 = vand.u32 2147483647, %v498
        %vm512 = vcmp.eq.f32.partialorder %v511, 8.507059e+37
        %v513 = vand.u32 %v498, 2147483648
        %v514 = vor.u32 1.1754944e-38, %v513
        %v515 = vsel %vm512, %v514, %v510
        %v516 = vrcp.pop %v501
        %v517 = vmul.f32 %v501, %v516
        %v518 = vsub.f32 1.0, %v517
        %v519 = vmul.f32 %v516, %v518
        %v520 = vadd.f32 %v516, %v519
        %vm521 = vweird.f32 %v501
        %vm522 = vweird.f32 %v516
        %vm523 = vmor %vm521, %vm522
        %v524 = vsel %vm523, %v516, %v520
        %v525 = vand.u32 2147483647, %v501
        %vm526 = vcmp.eq.f32.partialorder %v525, 8.507059e+37
        %v527 = vand.u32 %v501, 2147483648
        %v528 = vor.u32 1.1754944e-38, %v527
        %v529 = vsel %vm526, %v528, %v524
        %v530 = vmul.f32 %v493, %v515
        %v531 = vmul.f32 %v495, %v529
        %532 = vst.msk [vmem:[%s401] sm:$0xff] %vm483, %v530
        %533 = vst.msk [vmem:[%s401 + $0x8] sm:$0xff] %vm483, %v531
        %v534 = vld [vmem:[%s354] sm:$0xff]
        %v535 = vld [vmem:[%s354 + $0x8] sm:$0xff]
        %v537 = vsel %vm483, %v530, 0
        %v540 = vsel %vm483, %v531, 0
        %542 = vmatpush.msra.mxu0 0.0
        %543 = vmatpush.msra.mxu0 0.0
        %544 = vmatpush.msra.mxu0 0.0
        %545 = vmatpush.msra.mxu0 0.0
        %546 = vmatpush.msra.mxu0 0.0
        %547 = vmatpush.msra.mxu0 0.0
        %548 = vmatpush.msra.mxu0 0.0
        %549 = vmatpush.msra.mxu0 0.0
        %550 = vmatpush.msra.mxu0 0.0
        %551 = vmatpush.msra.mxu0 0.0
        %552 = vmatpush.msra.mxu0 0.0
        %553 = vmatpush.msra.mxu0 0.0
        %554 = vmatpush.msra.mxu0 0.0
        %555 = vmatpush.msra.mxu0 0.0
        %556 = vmatpush.msra.mxu0 %v535
        %557 = vmatpush.msra.mxu0 %v534
        %558 = vmatmul.f32.gmra.mxu0 %v537
        %v559 = vpop.f32.mrf.mxu0
        %v560 = vadd.f32 0.0, %v559
        %561 = vmatmul.f32.gmra.mxu0 %v540
        %v562 = vpop.f32.mrf.mxu0
        %v563 = vadd.f32 0.0, %v562
        %564 = vdwg.mxu0
        %s565 = scalar_lea.vmem %s324, 8 [#allocation2]
        %v566 = vld [vmem:[%s565] sm:$0xff]
        %s567 = scalar_lea.vmem %s334, 8 [#allocation5]
        %v568 = vld [vmem:[%s567] sm:$0xff]
        %569 = vxpose.xlu0.b32.start [1/16] %v566, 128
        %570 = vxpose.xlu0.b32.cont [2/16] 0.0, 128
        %571 = vxpose.xlu0.b32.cont [3/16] 0.0, 128
        %572 = vxpose.xlu0.b32.cont [4/16] 0.0, 128
        %573 = vxpose.xlu0.b32.cont [5/16] 0.0, 128
        %574 = vxpose.xlu0.b32.cont [6/16] 0.0, 128
        %575 = vxpose.xlu0.b32.cont [7/16] 0.0, 128
        %576 = vxpose.xlu0.b32.cont [8/16] 0.0, 128
        %577 = vxpose.xlu0.b32.cont [9/16] 0.0, 128
        %578 = vxpose.xlu0.b32.cont [10/16] 0.0, 128
        %579 = vxpose.xlu0.b32.cont [11/16] 0.0, 128
        %580 = vxpose.xlu0.b32.cont [12/16] 0.0, 128
        %581 = vxpose.xlu0.b32.cont [13/16] 0.0, 128
        %582 = vxpose.xlu0.b32.cont [14/16] 0.0, 128
        %583 = vxpose.xlu0.b32.cont [15/16] 0.0, 128
        %584 = vxpose.xlu0.b32.end [16/16] 0.0, 128
        %v585 = vpop.trf.xlu0
        %v586 = vpop.trf.xlu0
        %v587 = vpop.trf.xlu0
        %v588 = vpop.trf.xlu0
        %v589 = vpop.trf.xlu0
        %v590 = vpop.trf.xlu0
        %v591 = vpop.trf.xlu0
        %v592 = vpop.trf.xlu0
        %v593 = vpop.trf.xlu0
        %v594 = vpop.trf.xlu0
        %v595 = vpop.trf.xlu0
        %v596 = vpop.trf.xlu0
        %v597 = vpop.trf.xlu0
        %v598 = vpop.trf.xlu0
        %v599 = vpop.trf.xlu0
        %v600 = vpop.trf.xlu0
        %v602 = vsel %vm445, %v585, 0
        %v605 = vsel %vm445, %v586, 0
        %607 = vmatpush.msra.mxu0 0.0
        %608 = vmatpush.msra.mxu0 0.0
        %609 = vmatpush.msra.mxu0 0.0
        %610 = vmatpush.msra.mxu0 0.0
        %611 = vmatpush.msra.mxu0 0.0
        %612 = vmatpush.msra.mxu0 0.0
        %613 = vmatpush.msra.mxu0 0.0
        %614 = vmatpush.msra.mxu0 0.0
        %615 = vmatpush.msra.mxu0 0.0
        %616 = vmatpush.msra.mxu0 0.0
        %617 = vmatpush.msra.mxu0 0.0
        %618 = vmatpush.msra.mxu0 0.0
        %619 = vmatpush.msra.mxu0 0.0
        %620 = vmatpush.msra.mxu0 0.0
        %621 = vmatpush.msra.mxu0 0.0
        %622 = vmatpush.msra.mxu0 %v568
        %623 = vmatmul.f32.gmra.mxu0 %v602
        %v624 = vpop.f32.mrf.mxu0
        %v625 = vadd.f32 0.0, %v624
        %626 = vmatmul.f32.gmra.mxu0 %v605
        %v627 = vpop.f32.mrf.mxu0
        %v628 = vadd.f32 0.0, %v627
        %629 = vdwg.mxu0
        %v630 = vsel %vm479, %v625, -1e+09
        %v631 = vsel %vm480, %v628, -1e+09
        %v632 = vsel %vm483, %v630, -inf
        %633 = vmax.xlane.f32.xlu0 %v632
        %v634 = vpop.xlane.xlu0 %633
        %v635 = vsel %vm483, %v631, -inf
        %636 = vmax.xlane.f32.xlu0 %v635
        %v637 = vpop.xlane.xlu0 %636
        %v638 = vsub.f32 %v630, %v634
        %v639 = vsub.f32 %v631, %v637
        %v640 = vmul.f32 %v638, 1.442695
        %v641 = vpow.pop %v640
        %v642 = vmul.f32 %v639, 1.442695
        %v643 = vpow.pop %v642
        %v644 = vsel %vm483, %v641, 0.0
        %645 = vadd.xlane.f32.xlu0 %v644
        %v646 = vpop.xlane.xlu0 %645
        %v647 = vsel %vm483, %v643, 0.0
        %648 = vadd.xlane.f32.xlu0 %v647
        %v649 = vpop.xlane.xlu0 %648
        %v650 = vrcp.pop %v646
        %v651 = vmul.f32 %v646, %v650
        %v652 = vsub.f32 1.0, %v651
        %v653 = vmul.f32 %v650, %v652
        %v654 = vadd.f32 %v650, %v653
        %vm655 = vweird.f32 %v646
        %vm656 = vweird.f32 %v650
        %vm657 = vmor %vm655, %vm656
        %v658 = vsel %vm657, %v650, %v654
        %v659 = vand.u32 2147483647, %v646
        %vm660 = vcmp.eq.f32.partialorder %v659, 8.507059e+37
        %v661 = vand.u32 %v646, 2147483648
        %v662 = vor.u32 1.1754944e-38, %v661
        %v663 = vsel %vm660, %v662, %v658
        %v664 = vrcp.pop %v649
        %v665 = vmul.f32 %v649, %v664
        %v666 = vsub.f32 1.0, %v665
        %v667 = vmul.f32 %v664, %v666
        %v668 = vadd.f32 %v664, %v667
        %vm669 = vweird.f32 %v649
        %vm670 = vweird.f32 %v664
        %vm671 = vmor %vm669, %vm670
        %v672 = vsel %vm671, %v664, %v668
        %v673 = vand.u32 2147483647, %v649
        %vm674 = vcmp.eq.f32.partialorder %v673, 8.507059e+37
        %v675 = vand.u32 %v649, 2147483648
        %v676 = vor.u32 1.1754944e-38, %v675
        %v677 = vsel %vm674, %v676, %v672
        %v678 = vmul.f32 %v641, %v663
        %v679 = vmul.f32 %v643, %v677
        %s680 = scalar_lea.vmem %s401, 16 [#allocation11]
        %681 = vst.msk [vmem:[%s680] sm:$0xff] %vm483, %v678
        %682 = vst.msk [vmem:[%s680 + $0x8] sm:$0xff] %vm483, %v679
        %s683 = scalar_lea.vmem %s354, 16 [#allocation8]
        %v684 = vld [vmem:[%s683] sm:$0xff]
        %v685 = vld [vmem:[%s683 + $0x8] sm:$0xff]
        %v687 = vsel %vm483, %v678, 0
        %v690 = vsel %vm483, %v679, 0
        %692 = vmatpush.msra.mxu0 0.0
        %693 = vmatpush.msra.mxu0 0.0
        %694 = vmatpush.msra.mxu0 0.0
        %695 = vmatpush.msra.mxu0 0.0
        %696 = vmatpush.msra.mxu0 0.0
        %697 = vmatpush.msra.mxu0 0.0
        %698 = vmatpush.msra.mxu0 0.0
        %699 = vmatpush.msra.mxu0 0.0
        %700 = vmatpush.msra.mxu0 0.0
        %701 = vmatpush.msra.mxu0 0.0
        %702 = vmatpush.msra.mxu0 0.0
        %703 = vmatpush.msra.mxu0 0.0
        %704 = vmatpush.msra.mxu0 0.0
        %705 = vmatpush.msra.mxu0 0.0
        %706 = vmatpush.msra.mxu0 %v685
        %707 = vmatpush.msra.mxu0 %v684
        %708 = vmatmul.f32.gmra.mxu0 %v687
        %v709 = vpop.f32.mrf.mxu0
        %v710 = vadd.f32 0.0, %v709
        %711 = vmatmul.f32.gmra.mxu0 %v690
        %v712 = vpop.f32.mrf.mxu0
        %v713 = vadd.f32 0.0, %v712
        %714 = vdwg.mxu0
        %s715 = scalar_lea.vmem %s324, 16 [#allocation2]
        %v716 = vld [vmem:[%s715] sm:$0xff]
        %s717 = scalar_lea.vmem %s334, 16 [#allocation5]
        %v718 = vld [vmem:[%s717] sm:$0xff]
        %719 = vxpose.xlu0.b32.start [1/16] %v716, 128
        %720 = vxpose.xlu0.b32.cont [2/16] 0.0, 128
        %721 = vxpose.xlu0.b32.cont [3/16] 0.0, 128
        %722 = vxpose.xlu0.b32.cont [4/16] 0.0, 128
        %723 = vxpose.xlu0.b32.cont [5/16] 0.0, 128
        %724 = vxpose.xlu0.b32.cont [6/16] 0.0, 128
        %725 = vxpose.xlu0.b32.cont [7/16] 0.0, 128
        %726 = vxpose.xlu0.b32.cont [8/16] 0.0, 128
        %727 = vxpose.xlu0.b32.cont [9/16] 0.0, 128
        %728 = vxpose.xlu0.b32.cont [10/16] 0.0, 128
        %729 = vxpose.xlu0.b32.cont [11/16] 0.0, 128
        %730 = vxpose.xlu0.b32.cont [12/16] 0.0, 128
        %731 = vxpose.xlu0.b32.cont [13/16] 0.0, 128
        %732 = vxpose.xlu0.b32.cont [14/16] 0.0, 128
        %733 = vxpose.xlu0.b32.cont [15/16] 0.0, 128
        %734 = vxpose.xlu0.b32.end [16/16] 0.0, 128
        %v735 = vpop.trf.xlu0
        %v736 = vpop.trf.xlu0
        %v737 = vpop.trf.xlu0
        %v738 = vpop.trf.xlu0
        %v739 = vpop.trf.xlu0
        %v740 = vpop.trf.xlu0
        %v741 = vpop.trf.xlu0
        %v742 = vpop.trf.xlu0
        %v743 = vpop.trf.xlu0
        %v744 = vpop.trf.xlu0
        %v745 = vpop.trf.xlu0
        %v746 = vpop.trf.xlu0
        %v747 = vpop.trf.xlu0
        %v748 = vpop.trf.xlu0
        %v749 = vpop.trf.xlu0
        %v750 = vpop.trf.xlu0
        %v752 = vsel %vm445, %v735, 0
        %v755 = vsel %vm445, %v736, 0
        %757 = vmatpush.msra.mxu0 0.0
        %758 = vmatpush.msra.mxu0 0.0
        %759 = vmatpush.msra.mxu0 0.0
        %760 = vmatpush.msra.mxu0 0.0
        %761 = vmatpush.msra.mxu0 0.0
        %762 = vmatpush.msra.mxu0 0.0
        %763 = vmatpush.msra.mxu0 0.0
        %764 = vmatpush.msra.mxu0 0.0
        %765 = vmatpush.msra.mxu0 0.0
        %766 = vmatpush.msra.mxu0 0.0
        %767 = vmatpush.msra.mxu0 0.0
        %768 = vmatpush.msra.mxu0 0.0
        %769 = vmatpush.msra.mxu0 0.0
        %770 = vmatpush.msra.mxu0 0.0
        %771 = vmatpush.msra.mxu0 0.0
        %772 = vmatpush.msra.mxu0 %v718
        %773 = vmatmul.f32.gmra.mxu0 %v752
        %v774 = vpop.f32.mrf.mxu0
        %v775 = vadd.f32 0.0, %v774
        %776 = vmatmul.f32.gmra.mxu0 %v755
        %v777 = vpop.f32.mrf.mxu0
        %v778 = vadd.f32 0.0, %v777
        %779 = vdwg.mxu0
        %v780 = vsel %vm479, %v775, -1e+09
        %v781 = vsel %vm480, %v778, -1e+09
        %v782 = vsel %vm483, %v780, -inf
        %783 = vmax.xlane.f32.xlu0 %v782
        %v784 = vpop.xlane.xlu0 %783
        %v785 = vsel %vm483, %v781, -inf
        %786 = vmax.xlane.f32.xlu0 %v785
        %v787 = vpop.xlane.xlu0 %786
        %v788 = vsub.f32 %v780, %v784
        %v789 = vsub.f32 %v781, %v787
        %v790 = vmul.f32 %v788, 1.442695
        %v791 = vpow.pop %v790
        %v792 = vmul.f32 %v789, 1.442695
        %v793 = vpow.pop %v792
        %v794 = vsel %vm483, %v791, 0.0
        %795 = vadd.xlane.f32.xlu0 %v794
        %v796 = vpop.xlane.xlu0 %795
        %v797 = vsel %vm483, %v793, 0.0
        %798 = vadd.xlane.f32.xlu0 %v797
        %v799 = vpop.xlane.xlu0 %798
        %v800 = vrcp.pop %v796
        %v801 = vmul.f32 %v796, %v800
        %v802 = vsub.f32 1.0, %v801
        %v803 = vmul.f32 %v800, %v802
        %v804 = vadd.f32 %v800, %v803
        %vm805 = vweird.f32 %v796
        %vm806 = vweird.f32 %v800
        %vm807 = vmor %vm805, %vm806
        %v808 = vsel %vm807, %v800, %v804
        %v809 = vand.u32 2147483647, %v796
        %vm810 = vcmp.eq.f32.partialorder %v809, 8.507059e+37
        %v811 = vand.u32 %v796, 2147483648
        %v812 = vor.u32 1.1754944e-38, %v811
        %v813 = vsel %vm810, %v812, %v808
        %v814 = vrcp.pop %v799
        %v815 = vmul.f32 %v799, %v814
        %v816 = vsub.f32 1.0, %v815
        %v817 = vmul.f32 %v814, %v816
        %v818 = vadd.f32 %v814, %v817
        %vm819 = vweird.f32 %v799
        %vm820 = vweird.f32 %v814
        %vm821 = vmor %vm819, %vm820
        %v822 = vsel %vm821, %v814, %v818
        %v823 = vand.u32 2147483647, %v799
        %vm824 = vcmp.eq.f32.partialorder %v823, 8.507059e+37
        %v825 = vand.u32 %v799, 2147483648
        %v826 = vor.u32 1.1754944e-38, %v825
        %v827 = vsel %vm824, %v826, %v822
        %v828 = vmul.f32 %v791, %v813
        %v829 = vmul.f32 %v793, %v827
        %s830 = scalar_lea.vmem %s401, 32 [#allocation11]
        %831 = vst.msk [vmem:[%s830] sm:$0xff] %vm483, %v828
        %832 = vst.msk [vmem:[%s830 + $0x8] sm:$0xff] %vm483, %v829
        %s833 = scalar_lea.vmem %s354, 32 [#allocation8]
        %v834 = vld [vmem:[%s833] sm:$0xff]
        %v835 = vld [vmem:[%s833 + $0x8] sm:$0xff]
        %v837 = vsel %vm483, %v828, 0
        %v840 = vsel %vm483, %v829, 0
        %842 = vmatpush.msra.mxu0 0.0
        %843 = vmatpush.msra.mxu0 0.0
        %844 = vmatpush.msra.mxu0 0.0
        %845 = vmatpush.msra.mxu0 0.0
        %846 = vmatpush.msra.mxu0 0.0
        %847 = vmatpush.msra.mxu0 0.0
        %848 = vmatpush.msra.mxu0 0.0
        %849 = vmatpush.msra.mxu0 0.0
        %850 = vmatpush.msra.mxu0 0.0
        %851 = vmatpush.msra.mxu0 0.0
        %852 = vmatpush.msra.mxu0 0.0
        %853 = vmatpush.msra.mxu0 0.0
        %854 = vmatpush.msra.mxu0 0.0
        %855 = vmatpush.msra.mxu0 0.0
        %856 = vmatpush.msra.mxu0 %v835
        %857 = vmatpush.msra.mxu0 %v834
        %858 = vmatmul.f32.gmra.mxu0 %v837
        %v859 = vpop.f32.mrf.mxu0
        %v860 = vadd.f32 0.0, %v859
        %861 = vmatmul.f32.gmra.mxu0 %v840
        %v862 = vpop.f32.mrf.mxu0
        %v863 = vadd.f32 0.0, %v862
        %864 = vdwg.mxu0
        %s865 = scalar_lea.vmem %s324, 24 [#allocation2]
        %v866 = vld [vmem:[%s865] sm:$0xff]
        %s867 = scalar_lea.vmem %s334, 24 [#allocation5]
        %v868 = vld [vmem:[%s867] sm:$0xff]
        %869 = vxpose.xlu0.b32.start [1/16] %v866, 128
        %870 = vxpose.xlu0.b32.cont [2/16] 0.0, 128
        %871 = vxpose.xlu0.b32.cont [3/16] 0.0, 128
        %872 = vxpose.xlu0.b32.cont [4/16] 0.0, 128
        %873 = vxpose.xlu0.b32.cont [5/16] 0.0, 128
        %874 = vxpose.xlu0.b32.cont [6/16] 0.0, 128
        %875 = vxpose.xlu0.b32.cont [7/16] 0.0, 128
        %876 = vxpose.xlu0.b32.cont [8/16] 0.0, 128
        %877 = vxpose.xlu0.b32.cont [9/16] 0.0, 128
        %878 = vxpose.xlu0.b32.cont [10/16] 0.0, 128
        %879 = vxpose.xlu0.b32.cont [11/16] 0.0, 128
        %880 = vxpose.xlu0.b32.cont [12/16] 0.0, 128
        %881 = vxpose.xlu0.b32.cont [13/16] 0.0, 128
        %882 = vxpose.xlu0.b32.cont [14/16] 0.0, 128
        %883 = vxpose.xlu0.b32.cont [15/16] 0.0, 128
        %884 = vxpose.xlu0.b32.end [16/16] 0.0, 128
        %v885 = vpop.trf.xlu0
        %v886 = vpop.trf.xlu0
        %v887 = vpop.trf.xlu0
        %v888 = vpop.trf.xlu0
        %v889 = vpop.trf.xlu0
        %v890 = vpop.trf.xlu0
        %v891 = vpop.trf.xlu0
        %v892 = vpop.trf.xlu0
        %v893 = vpop.trf.xlu0
        %v894 = vpop.trf.xlu0
        %v895 = vpop.trf.xlu0
        %v896 = vpop.trf.xlu0
        %v897 = vpop.trf.xlu0
        %v898 = vpop.trf.xlu0
        %v899 = vpop.trf.xlu0
        %v900 = vpop.trf.xlu0
        %v902 = vsel %vm445, %v885, 0
        %v905 = vsel %vm445, %v886, 0
        %907 = vmatpush.msra.mxu0 0.0
        %908 = vmatpush.msra.mxu0 0.0
        %909 = vmatpush.msra.mxu0 0.0
        %910 = vmatpush.msra.mxu0 0.0
        %911 = vmatpush.msra.mxu0 0.0
        %912 = vmatpush.msra.mxu0 0.0
        %913 = vmatpush.msra.mxu0 0.0
        %914 = vmatpush.msra.mxu0 0.0
        %915 = vmatpush.msra.mxu0 0.0
        %916 = vmatpush.msra.mxu0 0.0
        %917 = vmatpush.msra.mxu0 0.0
        %918 = vmatpush.msra.mxu0 0.0
        %919 = vmatpush.msra.mxu0 0.0
        %920 = vmatpush.msra.mxu0 0.0
        %921 = vmatpush.msra.mxu0 0.0
        %922 = vmatpush.msra.mxu0 %v868
        %923 = vmatmul.f32.gmra.mxu0 %v902
        %v924 = vpop.f32.mrf.mxu0
        %v925 = vadd.f32 0.0, %v924
        %926 = vmatmul.f32.gmra.mxu0 %v905
        %v927 = vpop.f32.mrf.mxu0
        %v928 = vadd.f32 0.0, %v927
        %929 = vdwg.mxu0
        %v930 = vsel %vm479, %v925, -1e+09
        %v931 = vsel %vm480, %v928, -1e+09
        %v932 = vsel %vm483, %v930, -inf
        %933 = vmax.xlane.f32.xlu0 %v932
        %v934 = vpop.xlane.xlu0 %933
        %v935 = vsel %vm483, %v931, -inf
        %936 = vmax.xlane.f32.xlu0 %v935
        %v937 = vpop.xlane.xlu0 %936
        %v938 = vsub.f32 %v930, %v934
        %v939 = vsub.f32 %v931, %v937
        %v940 = vmul.f32 %v938, 1.442695
        %v941 = vpow.pop %v940
        %v942 = vmul.f32 %v939, 1.442695
        %v943 = vpow.pop %v942
        %v944 = vsel %vm483, %v941, 0.0
        %945 = vadd.xlane.f32.xlu0 %v944
        %v946 = vpop.xlane.xlu0 %945
        %v947 = vsel %vm483, %v943, 0.0
        %948 = vadd.xlane.f32.xlu0 %v947
        %v949 = vpop.xlane.xlu0 %948
        %v950 = vrcp.pop %v946
        %v951 = vmul.f32 %v946, %v950
        %v952 = vsub.f32 1.0, %v951
        %v953 = vmul.f32 %v950, %v952
        %v954 = vadd.f32 %v950, %v953
        %vm955 = vweird.f32 %v946
        %vm956 = vweird.f32 %v950
        %vm957 = vmor %vm955, %vm956
        %v958 = vsel %vm957, %v950, %v954
        %v959 = vand.u32 2147483647, %v946
        %vm960 = vcmp.eq.f32.partialorder %v959, 8.507059e+37
        %v961 = vand.u32 %v946, 2147483648
        %v962 = vor.u32 1.1754944e-38, %v961
        %v963 = vsel %vm960, %v962, %v958
        %v964 = vrcp.pop %v949
        %v965 = vmul.f32 %v949, %v964
        %v966 = vsub.f32 1.0, %v965
        %v967 = vmul.f32 %v964, %v966
        %v968 = vadd.f32 %v964, %v967
        %vm969 = vweird.f32 %v949
        %vm970 = vweird.f32 %v964
        %vm971 = vmor %vm969, %vm970
        %v972 = vsel %vm971, %v964, %v968
        %v973 = vand.u32 2147483647, %v949
        %vm974 = vcmp.eq.f32.partialorder %v973, 8.507059e+37
        %v975 = vand.u32 %v949, 2147483648
        %v976 = vor.u32 1.1754944e-38, %v975
        %v977 = vsel %vm974, %v976, %v972
        %v978 = vmul.f32 %v941, %v963
        %v979 = vmul.f32 %v943, %v977
        %s980 = scalar_lea.vmem %s401, 48 [#allocation11]
        %981 = vst.msk [vmem:[%s980] sm:$0xff] %vm483, %v978
        %982 = vst.msk [vmem:[%s980 + $0x8] sm:$0xff] %vm483, %v979
        %s983 = scalar_lea.vmem %s354, 48 [#allocation8]
        %v984 = vld [vmem:[%s983] sm:$0xff]
        %v985 = vld [vmem:[%s983 + $0x8] sm:$0xff]
        %v987 = vsel %vm483, %v978, 0
        %v990 = vsel %vm483, %v979, 0
        %992 = vmatpush.msra.mxu0 0.0
        %993 = vmatpush.msra.mxu0 0.0
        %994 = vmatpush.msra.mxu0 0.0
        %995 = vmatpush.msra.mxu0 0.0
        %996 = vmatpush.msra.mxu0 0.0
        %997 = vmatpush.msra.mxu0 0.0
        %998 = vmatpush.msra.mxu0 0.0
        %999 = vmatpush.msra.mxu0 0.0
        %1000 = vmatpush.msra.mxu0 0.0
        %1001 = vmatpush.msra.mxu0 0.0
        %1002 = vmatpush.msra.mxu0 0.0
        %1003 = vmatpush.msra.mxu0 0.0
        %1004 = vmatpush.msra.mxu0 0.0
        %1005 = vmatpush.msra.mxu0 0.0
        %1006 = vmatpush.msra.mxu0 %v985
        %1007 = vmatpush.msra.mxu0 %v984
        %1008 = vmatmul.f32.gmra.mxu0 %v987
        %v1009 = vpop.f32.mrf.mxu0
        %v1010 = vadd.f32 0.0, %v1009
        %1011 = vmatmul.f32.gmra.mxu0 %v990
        %v1012 = vpop.f32.mrf.mxu0
        %v1013 = vadd.f32 0.0, %v1012
        %1014 = vdwg.mxu0
        %1017 = vrot.lane.b32.xlu0 %v710, 32
        %v1018 = vpop.permute.xlu0 %1017
        %1019 = vrot.lane.b32.xlu0 %v713, 32
        %v1020 = vpop.permute.xlu0 %1019
        %1025 = vrot.lane.b32.xlu0 %v860, 64
        %v1026 = vpop.permute.xlu0 %1025
        %1027 = vrot.lane.b32.xlu0 %v863, 64
        %v1028 = vpop.permute.xlu0 %1027
        %1033 = vrot.lane.b32.xlu0 %v1010, 96
        %v1034 = vpop.permute.xlu0 %1033
        %1035 = vrot.lane.b32.xlu0 %v1013, 96
        %v1036 = vpop.permute.xlu0 %1035
        %vm1039 = vcmask 261120
        %v1040 = vsel %vm1039, %v560, %v1018
        %v1041 = vsel %vm1039, %v563, %v1020
        %vm1042 = vcmask 523264
        %v1043 = vsel %vm1042, %v1040, %v1026
        %v1044 = vsel %vm1042, %v1041, %v1028
        %vm1045 = vcmask 785408
        %v1046 = vsel %vm1045, %v1043, %v1034
        %v1047 = vsel %vm1045, %v1044, %v1036
        %1048 = vst [vmem:[%s394] sm:$0xff] %v1046
        %1049 = vst [vmem:[%s394 + $0x8] sm:$0xff] %v1047
        %s1050 = sand.u32 %s162, 1
        %s1051 = scalar_lea.sflag [#allocation4], %s1050
        %s1052 = sand.u32 %s162, 1
        %s1053 = smul.addr %s1052, 16
        %s1054 = scalar_lea.vmem [#allocation10], %s1053
        %s1055 = sand.u32 %s190, 1
        %s1056 = scalar_lea.sflag [#allocation12], %s1055
        %s1057 = sand.u32 %s190, 1
        %s1058 = smul.addr %s1057, 64
        %s1059 = scalar_lea.vmem [#allocation11], %s1058
        // Predicated region
        $region53: #{tpu_custom_call.1} parent=35 // pred_check
          %p1060 = pneg %p172
        $region54: #{tpu_custom_call.1} parent=35 // pred_check_branch
          %1062 = sbr.rel (%p1060) target = $region56
        $region55: #{tpu_custom_call.1} parent=35 // pred_region
          %s1063 = smul.u32 2, %s37
          %1065 = vsyncadd %s1051, 0
          %s1066 = smul.addr %s36, 2
          %s1067 = sadd.s32 %s1063, %s1066
          %s1068 = smul.addr %s1067, 8
          %s1069 = scalar_lea.hbm %s4, %s1068
          %s1070 = sshll.u32 %s1054, 4
          %s1071 = int_to_ptr.vmem [resolvable:$true] %s1070
          %s1072 = sshll.u32 %s1069, 4
          %s1073 = int_to_ptr.hbm [resolvable:$true] %s1072
          %1078 = dma.vmem_to_hbm [thread:$0]  %s1071, 256, %s1073, %s1051, 128, 128, 8
        $region56: #{tpu_custom_call.1} parent=35 // pred_fallthru
          _
        // Predicated region
        $region57: #{tpu_custom_call.1} parent=35 // pred_check
          %p1079 = pneg %p200
        $region58: #{tpu_custom_call.1} parent=35 // pred_check_branch
          %1081 = sbr.rel (%p1079) target = $region60
        $region59: #{tpu_custom_call.1} parent=35 // pred_region
          %s1082 = smul.u32 2, %s37
          %1084 = vsyncadd %s1056, 0
          %s1085 = smul.addr %s36, 8
          %s1086 = sadd.s32 %s1082, %s1085
          %s1087 = smul.addr %s1086, 8
          %s1088 = scalar_lea.hbm %s5, %s1087
          %s1089 = sshll.u32 %s1059, 4
          %s1090 = int_to_ptr.vmem [resolvable:$true] %s1089
          %s1091 = sshll.u32 %s1088, 4
          %s1092 = int_to_ptr.hbm [resolvable:$true] %s1091
          %1097 = dma.vmem_to_hbm [thread:$0]  %s1090, 1024, %s1092, %s1056, 128, 128, 8
        $region60: #{tpu_custom_call.1} parent=35 // pred_fallthru
          _
      $region36: #{tpu_custom_call.1} parent=5 // pred_fallthru
        _
      %p1098 = scmp.le.s32.totalorder 2, %s27
      // Predicated region
      $region61: #{tpu_custom_call.1} parent=5 // pred_check
        %p1099 = pneg %p1098
      $region62: #{tpu_custom_call.1} parent=5 // pred_check_branch
        %1101 = sbr.rel (%p1099) target = $region64
      $region63: #{tpu_custom_call.1} parent=5 // pred_region
        %s1102 = ssub.s32 %s27, 2
        // Predicated region
        $region65: #{tpu_custom_call.1} parent=63 // pred_check
          %p1103 = pneg %p178
        $region66: #{tpu_custom_call.1} parent=63 // pred_check_branch
          %1105 = sbr.rel (%p1103) target = $region68
        $region67: #{tpu_custom_call.1} parent=63 // pred_region
          %s1106 = sand.u32 %s163, 1
          %s1107 = scalar_lea.sflag [#allocation4], %s1106
          %s1108 = sand.u32 %s163, 1
          %s1109 = smul.addr %s1108, 16
          %s1110 = scalar_lea.vmem [#allocation10], %s1109
          %1112 = dma.done %s1107, 256
        $region68: #{tpu_custom_call.1} parent=63 // pred_fallthru
          _
        // Predicated region
        $region69: #{tpu_custom_call.1} parent=63 // pred_check
          %p1113 = pneg %p206
        $region70: #{tpu_custom_call.1} parent=63 // pred_check_branch
          %1115 = sbr.rel (%p1113) target = $region72
        $region71: #{tpu_custom_call.1} parent=63 // pred_region
          %s1116 = sand.u32 %s191, 1
          %s1117 = scalar_lea.sflag [#allocation12], %s1116
          %s1118 = sand.u32 %s191, 1
          %s1119 = smul.addr %s1118, 64
          %s1120 = scalar_lea.vmem [#allocation11], %s1119
          %1122 = dma.done %s1117, 1024
        $region72: #{tpu_custom_call.1} parent=63 // pred_fallthru
          _
      $region64: #{tpu_custom_call.1} parent=5 // pred_fallthru
        _
    $region6: #{tpu_custom_call.1} parent=1 // loop_footer
      %s31 = sadd.s32 1, %s27
    $region7: #{tpu_custom_call.1} parent=1 // loop_footer_branch
      %26 = sbr.rel target = $region3
    $region8: #{tpu_custom_call.1} parent=1 // loop_exit
      _
    %1123 = vsyncpa [#allocation3], 1
    %s1124 = scalar_lea.sflag [#allocation3], 1
    %1125 = vsyncpa %s1124, 1
    %1126 = vsyncpa [#allocation6], 1
    %s1127 = scalar_lea.sflag [#allocation6], 1
    %1128 = vsyncpa %s1127, 1
    %1129 = vsyncpa [#allocation9], 1
    %s1130 = scalar_lea.sflag [#allocation9], 1
    %1131 = vsyncpa %s1130, 1
    %1132 = vsyncpa [#allocation4], 1
    %s1133 = scalar_lea.sflag [#allocation4], 1
    %1134 = vsyncpa %s1133, 1
    %1135 = vsyncpa [#allocation12], 1
    %s1136 = scalar_lea.sflag [#allocation12], 1
    %1137 = vsyncpa %s1136, 1

</llo_original>
